<compile_context>
chip_gen: v5e
topology: v5e:2x2
jax: 0.10.0
libtpu: 0.0.40
codegen_flags: <defaults>
</compile_context>

<pallas_src>
import functools

import jax
import jax.numpy as jnp
from jax.experimental import pallas as pl
from jax.experimental.pallas import tpu as pltpu

VMEM_LIMIT = 32 * 1024 * 1024  # fits v7x's 64 MiB VMEM comfortably


def _round_up(x, m):
    return (x + m - 1) // m * m


# ----------------------------------------------------------------------------
# Pallas kernels
# ----------------------------------------------------------------------------
def _mm_bias_kernel(x_ref, w_ref, b_ref, o_ref, *, relu):
    # bf16 x bf16 -> f32 accumulate on the MXU; bias/ReLU in f32 on the VPU.
    y = jnp.dot(x_ref[...], w_ref[...], preferred_element_type=jnp.float32)
    y = y + b_ref[...]
    if relu:
        y = jnp.maximum(y, 0.0)
    o_ref[...] = y


def _mm_bias_res_kernel(x_ref, w_ref, b_ref, r_ref, o_ref, *, relu):
    y = jnp.dot(x_ref[...], w_ref[...], preferred_element_type=jnp.float32)
    y = y + b_ref[...] + r_ref[...]
    if relu:
        y = jnp.maximum(y, 0.0)
    o_ref[...] = y


def _mm_bias_dual_kernel(x_ref, w_ref, b_ref, x2_ref, w2_ref, b2_ref, o_ref,
                         *, relu):
    # conv3 GEMM + fused downsample 1x1 GEMM + both biases + ReLU.
    y = jnp.dot(x_ref[...], w_ref[...], preferred_element_type=jnp.float32)
    y = y + jnp.dot(x2_ref[...], w2_ref[...],
                    preferred_element_type=jnp.float32)
    y = y + b_ref[...] + b2_ref[...]
    if relu:
        y = jnp.maximum(y, 0.0)
    o_ref[...] = y


def _maxpool_kernel(x_ref, o_ref):
    # x_ref: (9, TM, C) stacked windows -> elementwise max over window axis
    o_ref[...] = jnp.max(x_ref[...], axis=0)


# ----------------------------------------------------------------------------
# Tiling helpers
# ----------------------------------------------------------------------------
def _pick_tiles(M, N):
    tm = min(128, _round_up(M, 8))          # don't pad tiny row counts to 128
    tn = 256 if N % 256 == 0 else N          # N in {64,128,256,512,1024,2048}
    return tm, tn


def _gemm_compiler_params():
    return pltpu.CompilerParams(
        dimension_semantics=("parallel", "parallel"),
        vmem_limit_bytes=VMEM_LIMIT,
    )


# ----------------------------------------------------------------------------
# Pallas wrappers
# ----------------------------------------------------------------------------
def matmul_bias(x, w, bias, *, relu, residual=None):
    """(M,K)bf16 @ (K,N)bf16 + bias [+ residual] [ReLU] -> (M,N) f32."""
    M, K = x.shape
    _, N = w.shape
    TM, TN = _pick_tiles(M, N)
    M_pad = _round_up(M, TM)
    if M_pad != M:
        x = jnp.pad(x, ((0, M_pad - M), (0, 0)))
        if residual is not None:
            residual = jnp.pad(residual, ((0, M_pad - M), (0, 0)))
    b2 = bias.reshape(1, N)

    in_specs = [
        pl.BlockSpec((TM, K), lambda i, j: (i, 0)),   # activation tile (bf16)
        pl.BlockSpec((K, TN), lambda i, j: (0, j)),   # weight column block
        pl.BlockSpec((1, TN), lambda i, j: (0, j)),   # folded-BN bias
    ]
    args = [x, w, b2]
    if residual is not None:
        in_specs.append(pl.BlockSpec((TM, TN), lambda i, j: (i, j)))
        args.append(residual)
        kernel = functools.partial(_mm_bias_res_kernel, relu=relu)
    else:
        kernel = functools.partial(_mm_bias_kernel, relu=relu)

    out = pl.pallas_call(
        kernel,
        out_shape=jax.ShapeDtypeStruct((M_pad, N), jnp.float32),
        grid=(M_pad // TM, N // TN),
        in_specs=in_specs,
        out_specs=pl.BlockSpec((TM, TN), lambda i, j: (i, j)),
        compiler_params=_gemm_compiler_params(),
    )(*args)
    return out[:M] if M_pad != M else out


def matmul_bias_dual(h, w3, b3, xs, wd, bd, *, relu=True):
    """relu(h @ w3 + b3 + xs @ wd + bd) -- conv3 + fused downsample."""
    M, K1 = h.shape
    _, K2 = xs.shape
    N = w3.shape[1]
    TM, TN = _pick_tiles(M, N)
    M_pad = _round_up(M, TM)
    if M_pad != M:
        h = jnp.pad(h, ((0, M_pad - M), (0, 0)))
        xs = jnp.pad(xs, ((0, M_pad - M), (0, 0)))
    b3r = b3.reshape(1, N)
    bdr = bd.reshape(1, N)

    out = pl.pallas_call(
        functools.partial(_mm_bias_dual_kernel, relu=relu),
        out_shape=jax.ShapeDtypeStruct((M_pad, N), jnp.float32),
        grid=(M_pad // TM, N // TN),
        in_specs=[
            pl.BlockSpec((TM, K1), lambda i, j: (i, 0)),
            pl.BlockSpec((K1, TN), lambda i, j: (0, j)),
            pl.BlockSpec((1, TN), lambda i, j: (0, j)),
            pl.BlockSpec((TM, K2), lambda i, j: (i, 0)),
            pl.BlockSpec((K2, TN), lambda i, j: (0, j)),
            pl.BlockSpec((1, TN), lambda i, j: (0, j)),
        ],
        out_specs=pl.BlockSpec((TM, TN), lambda i, j: (i, j)),
        compiler_params=_gemm_compiler_params(),
    )(h, w3, b3r, xs, wd, bdr)
    return out[:M] if M_pad != M else out


def maxpool_3x3_s2_p1(x):
    """MaxPool2d(kernel=3, stride=2, padding=1) on an NHWC tensor, tiled."""
    Nb, H, W, C = x.shape
    Ho = (H + 2 - 3) // 2 + 1
    Wo = (W + 2 - 3) // 2 + 1
    xp = jnp.pad(x, ((0, 0), (1, 1), (1, 1), (0, 0)),
                 constant_values=-jnp.inf)
    wins = []
    for kh in range(3):
        for kw in range(3):
            sl = xp[:, kh:kh + 2 * (Ho - 1) + 1:2, kw:kw + 2 * (Wo - 1) + 1:2, :]
            wins.append(sl)
    M = Nb * Ho * Wo
    stacked = jnp.stack(wins, axis=0).reshape(9, M, C)
    TM = min(512, _round_up(M, 8))
    M_pad = _round_up(M, TM)
    if M_pad != M:
        stacked = jnp.pad(stacked, ((0, 0), (0, M_pad - M), (0, 0)),
                          constant_values=-jnp.inf)

    out = pl.pallas_call(
        _maxpool_kernel,
        out_shape=jax.ShapeDtypeStruct((M_pad, C), jnp.float32),
        grid=(M_pad // TM,),
        in_specs=[pl.BlockSpec((9, TM, C), lambda i: (0, i, 0))],
        out_specs=pl.BlockSpec((TM, C), lambda i: (i, 0)),
        compiler_params=pltpu.CompilerParams(
            dimension_semantics=("parallel",),
            vmem_limit_bytes=VMEM_LIMIT),
    )(stacked)
    return out[:M].reshape(Nb, Ho, Wo, C)


# ----------------------------------------------------------------------------
# Plain-JAX glue: patch extraction for 3x3 convs (bf16), 1x1 skips it entirely
# ----------------------------------------------------------------------------
def _im2col(xb, KH, KW, stride, padding, dilation):
    """xb: NHWC bf16 -> (Nb*Ho*Wo, KH*KW*Cin) bf16 patches."""
    Nb, H, W, Cin = xb.shape
    Ho = (H + 2 * padding - dilation * (KH - 1) - 1) // stride + 1
    Wo = (W + 2 * padding - dilation * (KW - 1) - 1) // stride + 1
    xp = jnp.pad(xb, ((0, 0), (padding, padding), (padding, padding), (0, 0)))
    cols = []
    for kh in range(KH):
        for kw in range(KW):
            h0 = kh * dilation
            w0 = kw * dilation
            sl = xp[:, h0:h0 + stride * (Ho - 1) + 1:stride,
                    w0:w0 + stride * (Wo - 1) + 1:stride, :]
            cols.append(sl)
    patches = jnp.concatenate(cols, axis=-1).reshape(Nb * Ho * Wo, KH * KW * Cin)
    return patches, (Nb, Ho, Wo)


def conv_bn(x, p, *, stride=1, padding=0, dilation=1, relu=True, residual=None):
    """Conv + folded-BN (+ residual) (+ ReLU) as one Pallas GEMM."""
    wmat, bias = p["w"], p["b"]
    KH, KW = p["k"]
    Cin = x.shape[-1]
    N = wmat.shape[1]
    xb = x.astype(jnp.bfloat16)
    if KH == 1 and KW == 1:
        # 1x1 conv: no im2col, just (strided) reshape of the NHWC buffer.
        if stride != 1:
            xb = xb[:, ::stride, ::stride, :]
        Nb, Ho, Wo, _ = xb.shape
        lhs = xb.reshape(Nb * Ho * Wo, Cin)
    else:
        # TODO(synk): 3x3 taps still go through XLA-side im2col (bf16) rather
        # than an in-kernel tap-accumulated GEMM.
        lhs, (Nb, Ho, Wo) = _im2col(xb, KH, KW, stride, padding, dilation)
    res_flat = residual.reshape(-1, N) if residual is not None else None
    out = matmul_bias(lhs, wmat, bias, relu=relu, residual=res_flat)
    return out.reshape(Nb, Ho, Wo, N)


def conv1x1_add_down(h, x, p3, pd, *, down_stride):
    """Fused: relu(conv1x1(h; conv3) + conv1x1(x[::s]; downsample))."""
    Nb, Ho, Wo, C1 = h.shape
    N = p3["w"].shape[1]
    hb = h.astype(jnp.bfloat16).reshape(Nb * Ho * Wo, C1)
    xs = x
    if down_stride != 1:
        xs = xs[:, ::down_stride, ::down_stride, :]
    C2 = xs.shape[-1]
    xsb = xs.astype(jnp.bfloat16).reshape(Nb * Ho * Wo, C2)
    out = matmul_bias_dual(hb, p3["w"], p3["b"], xsb, pd["w"], pd["b"],
                           relu=True)
    return out.reshape(Nb, Ho, Wo, N)


# ----------------------------------------------------------------------------
# Deterministic synthetic parameters (eval-mode BN folded into weights/bias)
# ----------------------------------------------------------------------------
class ParamGen:
    def __init__(self, key):
        self.key = key

    def conv_bn(self, cout, cin, kh, kw, eps=1e-5):
        self.key, k1, k2, k3, k4, k5 = jax.random.split(self.key, 6)
        fan_in = cin * kh * kw
        w = (jax.random.normal(k1, (cout, cin, kh, kw), jnp.float32)
             * (2.0 / fan_in) ** 0.5)
        gamma = 1.0 + 0.1 * jax.random.normal(k2, (cout,), jnp.float32)
        beta = 0.1 * jax.random.normal(k3, (cout,), jnp.float32)
        mean = 0.1 * jax.random.normal(k4, (cout,), jnp.float32)
        var = jax.random.uniform(k5, (cout,), jnp.float32, 0.5, 1.5)
        scale = gamma / jnp.sqrt(var + eps)
        bias = beta - mean * scale
        # Pre-pack weight as (KH*KW*Cin, Cout), fold BN scale, cast to bf16.
        wmat = jnp.transpose(w, (2, 3, 1, 0)).reshape(kh * kw * cin, cout)
        wmat = wmat * scale[None, :]
        return {"w": wmat.astype(jnp.bfloat16), "b": bias, "k": (kh, kw)}


def _make_bottleneck(pg, inplanes, planes, *, stride, dilation, padding,
                     has_down, down_stride):
    p = {
        "conv1": pg.conv_bn(planes, inplanes, 1, 1),
        "conv2": pg.conv_bn(planes, planes, 3, 3),
        "conv3": pg.conv_bn(planes * 4, planes, 1, 1),
        "cfg": dict(stride=stride, dilation=dilation, padding=padding,
                    down_stride=down_stride),
    }
    if has_down:
        p["down"] = pg.conv_bn(planes * 4, inplanes, 1, 1)
    return p


def build_params(key):
    """ResNet-50 deep-stem, dilate_scale=8 (layer3 dil=2, layer4 dil=4)."""
    pg = ParamGen(key)
    params = {
        "conv1": pg.conv_bn(64, 3, 3, 3),
        "conv2": pg.conv_bn(64, 64, 3, 3),
        "conv3": pg.conv_bn(128, 64, 3, 3),
    }

    def make_layer(inplanes, planes, blocks, first_cfg, rest_cfg):
        layer = [_make_bottleneck(pg, inplanes, planes, has_down=True,
                                  **first_cfg)]
        for _ in range(blocks - 1):
            layer.append(_make_bottleneck(pg, planes * 4, planes,
                                          has_down=False, down_stride=1,
                                          **rest_cfg))
        return layer

    # layer1: no stride, no dilation
    params["layer1"] = make_layer(
        128, 64, 3,
        dict(stride=1, dilation=1, padding=1, down_stride=1),
        dict(stride=1, dilation=1, padding=1))
    # layer2: stride 2 in first block
    params["layer2"] = make_layer(
        256, 128, 4,
        dict(stride=2, dilation=1, padding=1, down_stride=2),
        dict(stride=1, dilation=1, padding=1))
    # layer3: _nostride_dilate(dilate=2): first block stride->1 dil=1,
    #         remaining 3x3 convs dil=2 pad=2, downsample stride->1
    params["layer3"] = make_layer(
        512, 256, 6,
        dict(stride=1, dilation=1, padding=1, down_stride=1),
        dict(stride=1, dilation=2, padding=2))
    # layer4: _nostride_dilate(dilate=4): first block stride->1 dil=2 pad=2,
    #         remaining 3x3 convs dil=4 pad=4, downsample stride->1
    params["layer4"] = make_layer(
        1024, 512, 3,
        dict(stride=1, dilation=2, padding=2, down_stride=1),
        dict(stride=1, dilation=4, padding=4))
    return params


# ----------------------------------------------------------------------------
# Forward pass
# ----------------------------------------------------------------------------
def bottleneck_forward(x, p):
    cfg = p["cfg"]
    out = conv_bn(x, p["conv1"], relu=True)                         # 1x1
    out = conv_bn(out, p["conv2"], stride=cfg["stride"],
                  padding=cfg["padding"], dilation=cfg["dilation"],
                  relu=True)                                        # 3x3
    if "down" in p:
        # conv3 + downsample 1x1 + biases + residual add + ReLU in one kernel
        out = conv1x1_add_down(out, x, p["conv3"], p["down"],
                               down_stride=cfg["down_stride"])
    else:
        # conv3 + residual add + ReLU fused in one Pallas GEMM kernel
        out = conv_bn(out, p["conv3"], relu=True, residual=x)
    return out


def resnet50_forward(x_nchw, params):
    x = jnp.transpose(x_nchw, (0, 2, 3, 1))  # NCHW -> NHWC for kernels
    x = conv_bn(x, params["conv1"], stride=2, padding=1, relu=True)
    x = conv_bn(x, params["conv2"], stride=1, padding=1, relu=True)
    x = conv_bn(x, params["conv3"], stride=1, padding=1, relu=True)
    x = maxpool_3x3_s2_p1(x)
    for blk in params["layer1"]:
        x = bottleneck_forward(x, blk)
    x_1 = x
    for blk in params["layer2"]:
        x = bottleneck_forward(x, blk)
    for blk in params["layer3"]:
        x = bottleneck_forward(x, blk)
    aux = x
    for blk in params["layer4"]:
        x = bottleneck_forward(x, blk)
    to_nchw = lambda t: jnp.transpose(t, (0, 3, 1, 2))
    return to_nchw(x_1), to_nchw(aux), to_nchw(x)


if __name__ == "__main__":
    key = jax.random.PRNGKey(0)
    pkey, xkey = jax.random.split(key)
    params = build_params(pkey)
    x = jax.random.normal(xkey, (2, 3, 32, 32), jnp.float32)

    x_1, aux, out = resnet50_forward(x, params)
    (x_1, aux, out) = jax.block_until_ready((x_1, aux, out))

    assert x_1.shape == (2, 256, 8, 8), x_1.shape
    assert aux.shape == (2, 1024, 4, 4), aux.shape
    assert out.shape == (2, 2048, 4, 4), out.shape
    assert bool(jnp.isfinite(out).all())
    print("KERNEL_OK")
</pallas_src>

<mosaic_0001>
module attributes {stable_mosaic.version = 11 : i64} {
  func.func @_mm_bias_kernel(%arg0: i32, %arg1: i32, %arg2: memref<128x27xbf16, #tpu.memory_space<vmem>>, %arg3: memref<27x64xbf16, #tpu.memory_space<vmem>>, %arg4: memref<1x64xf32, #tpu.memory_space<vmem>>, %arg5: memref<128x64xf32, #tpu.memory_space<vmem>>) attributes {dimension_semantics = [#tpu.dimension_semantics<parallel>, #tpu.dimension_semantics<parallel>], iteration_bounds = array<i64: 4, 1>, scalar_prefetch = 0 : i64, scratch_operands = 0 : i64, tpu.core_type = #tpu.core_type<tc>, window_params = [{transform_indices = @transform_0, window_bounds = array<i64: 128, 27>}, {transform_indices = @transform_1, window_bounds = array<i64: 27, 64>}, {transform_indices = @transform_2, window_bounds = array<i64: 1, 64>}, {transform_indices = @transform_3, window_bounds = array<i64: 128, 64>}]} {
    %c0 = arith.constant 0 : index
    %c0_0 = arith.constant 0 : index
    %0 = vector.load %arg2[%c0, %c0_0] : memref<128x27xbf16, #tpu.memory_space<vmem>>, vector<128x27xbf16>
    %c0_1 = arith.constant 0 : index
    %c0_2 = arith.constant 0 : index
    %1 = vector.load %arg3[%c0_1, %c0_2] : memref<27x64xbf16, #tpu.memory_space<vmem>>, vector<27x64xbf16>
    %cst = arith.constant dense<0.000000e+00> : vector<128x64xf32>
    %2 = tpu.matmul %0, %1, %cst {dimension_numbers = #tpu.dot_dimension_numbers<[1], [0], [0], [1], [0, 0, 1, 1], [], []>} : vector<128x27xbf16>, vector<27x64xbf16>, vector<128x64xf32> -> vector<128x64xf32>
    %c0_3 = arith.constant 0 : index
    %c0_4 = arith.constant 0 : index
    %3 = vector.load %arg4[%c0_3, %c0_4] : memref<1x64xf32, #tpu.memory_space<vmem>>, vector<1x64xf32>
    %4 = vector.broadcast %3 : vector<1x64xf32> to vector<128x64xf32>
    %5 = arith.addf %2, %4 : vector<128x64xf32>
    %cst_5 = arith.constant 0.000000e+00 : f32
    %6 = vector.broadcast %cst_5 : f32 to vector<128x64xf32>
    %7 = arith.maximumf %5, %6 : vector<128x64xf32>
    %c0_6 = arith.constant 0 : index
    %c0_7 = arith.constant 0 : index
    %8 = vector.load %arg5[%c0_6, %c0_7] : memref<128x64xf32, #tpu.memory_space<vmem>>, vector<128x64xf32>
    tpu.vector_store %arg5[%c0_6, %c0_7], %7 {strides = array<i32>} : memref<128x64xf32, #tpu.memory_space<vmem>>, vector<128x64xf32>,
    return
  }
  func.func @transform_0(%arg0: i32, %arg1: i32) -> (i32, i32) {
    %c0_i32 = arith.constant 0 : i32
    %c0_i32_0 = arith.constant 0 : i32
    return %arg0, %c0_i32 : i32, i32
  }
  func.func @transform_1(%arg0: i32, %arg1: i32) -> (i32, i32) {
    %c0_i32 = arith.constant 0 : i32
    %c0_i32_0 = arith.constant 0 : i32
    return %c0_i32, %arg1 : i32, i32
  }
  func.func @transform_2(%arg0: i32, %arg1: i32) -> (i32, i32) {
    %c0_i32 = arith.constant 0 : i32
    %c0_i32_0 = arith.constant 0 : i32
    return %c0_i32, %arg1 : i32, i32
  }
  func.func @transform_3(%arg0: i32, %arg1: i32) -> (i32, i32) {
    %c0_i32 = arith.constant 0 : i32
    return %arg0, %arg1 : i32, i32
  }
}

</mosaic_0001>

<llo_original>
// kernel: tpu_custom_call.1
$region0: #{tpu_custom_call.1}
  #allocation0 [shape = 'u32[]', space=smem, size = 0x4, offset = 0x4, fixed_abs, tag = 'smem constant byte address 0x4 - core index']
  #allocation1 [shape = 'u32[72,128]{1,0:T(1,128)}', space=vmem, size = 0x9000, scoped, tag = 'internal scratch']
  %s0 = inlined_call_operand.vmem [shape: bf16[512,27], index: 0, kind: input, shape index: {}]
  %s1 = inlined_call_operand.vmem [shape: bf16[27,64], index: 1, kind: input, shape index: {}]
  %s2 = inlined_call_operand.vmem [shape: f32[1,64], index: 2, kind: input, shape index: {}]
  %s3 = inlined_call_operand.vmem [shape: f32[512,64], index: 3, kind: output, shape index: {}]
  %s4 = sld [smem:[#allocation0]]
  $region45: #{tpu_custom_call.1} parent=0
    _
  %s6 = ssub.s32 1, %s4
  %s7 = scalar_select 0, %s6, %s4
  loop: start=0, step=1, limit=6
  $region2: #{tpu_custom_call.1} parent=0 // loop_pre_header
    _
  $region3: #{tpu_custom_call.1} parent=0 // loop_header
    %s9 = sphi 0, %s13
    %p10 = scmp.ge.s32.totalorder %s9, 6
    %s16 = sphi 0, %s28
    %s17 = sphi 0, %s24
    %s18 = sphi 0, %s16
    %s19 = sphi 0, %s17
    %s20 = sphi 0, %s18
    %s21 = sphi 0, %s19
    %s31 = sphi 0, %s33
    %s34 = sphi 0, %s31
    %s35 = sphi 0, %s34
    %s51 = sphi 0, %s35
    %s57 = sphi 0, %s59
    %s60 = sphi 0, %s57
    %s61 = sphi 0, %s60
    %s77 = sphi 0, %s61
    %s83 = sphi 0, %s85
    %s86 = sphi 0, %s83
    %s87 = sphi 0, %s86
    %s103 = sphi 0, %s87
    %s111 = sphi 0, %s113
    %s114 = sphi 0, %s111
    %s115 = sphi 0, %s114
    %s131 = sphi 0, %s115
  $region4: #{tpu_custom_call.1} parent=0 // loop_header_branch
    %12 = sbr.rel (%p10) target = $region8
  $region5: #{tpu_custom_call.1} parent=0 // loop_body
    %s14 = ssub.s32 %s9, 1
    %s15 = ssub.s32 %s9, 2
    %s22 = sadd.s32 1, %s17
    %p23 = scmp.ge.s32.totalorder %s22, 1
    %s24 = scalar_select %p23, 0, %s22
    %s25 = sadd.s32 1, %s16
    %s26 = scalar_select %p23, %s25, %s16
    %p27 = scmp.ge.s32.totalorder %s26, 4
    %s28 = scalar_select %p27, 0, %s26
    %s29 = ssub.s32 %s16, %s28
    %p30 = scmp.eq.s32.totalorder %s29, 0
    %s32 = sadd.s32 %s31, 1
    %s33 = scalar_select %p30, %s31, %s32
    %p36 = pneg %p30
    %p37 = scmp.eq.s32.totalorder %s9, 3
    %p38 = por %p36, %p37
    %p39 = scmp.ne.s32.totalorder %s31, %s34
    %p40 = scmp.eq.s32.totalorder %s9, 0
    %p41 = por %p39, %p40
    %p42 = scmp.ne.s32.totalorder %s31, %s34
    %p43 = scmp.eq.s32.totalorder %s14, 3
    %p44 = por %p42, %p43
    %p45 = scmp.ne.s32.totalorder %s34, %s35
    %p46 = scmp.eq.s32.totalorder %s14, 0
    %p47 = por %p45, %p46
    %p48 = scmp.ne.s32.totalorder %s34, %s35
    %p49 = scmp.eq.s32.totalorder %s15, 3
    %p50 = por %p48, %p49
    %p52 = scmp.ne.s32.totalorder %s35, %s51
    %p53 = scmp.eq.s32.totalorder %s15, 0
    %p54 = por %p52, %p53
    %s55 = ssub.s32 %s17, %s24
    %p56 = scmp.eq.s32.totalorder %s55, 0
    %s58 = sadd.s32 %s57, 1
    %s59 = scalar_select %p56, %s57, %s58
    %p62 = pneg %p56
    %p63 = scmp.eq.s32.totalorder %s9, 3
    %p64 = por %p62, %p63
    %p65 = scmp.ne.s32.totalorder %s57, %s60
    %p66 = scmp.eq.s32.totalorder %s9, 0
    %p67 = por %p65, %p66
    %p68 = scmp.ne.s32.totalorder %s57, %s60
    %p69 = scmp.eq.s32.totalorder %s14, 3
    %p70 = por %p68, %p69
    %p71 = scmp.ne.s32.totalorder %s60, %s61
    %p72 = scmp.eq.s32.totalorder %s14, 0
    %p73 = por %p71, %p72
    %p74 = scmp.ne.s32.totalorder %s60, %s61
    %p75 = scmp.eq.s32.totalorder %s15, 3
    %p76 = por %p74, %p75
    %p78 = scmp.ne.s32.totalorder %s61, %s77
    %p79 = scmp.eq.s32.totalorder %s15, 0
    %p80 = por %p78, %p79
    %s81 = ssub.s32 %s17, %s24
    %p82 = scmp.eq.s32.totalorder %s81, 0
    %s84 = sadd.s32 %s83, 1
    %s85 = scalar_select %p82, %s83, %s84
    %p88 = pneg %p82
    %p89 = scmp.eq.s32.totalorder %s9, 3
    %p90 = por %p88, %p89
    %p91 = scmp.ne.s32.totalorder %s83, %s86
    %p92 = scmp.eq.s32.totalorder %s9, 0
    %p93 = por %p91, %p92
    %p94 = scmp.ne.s32.totalorder %s83, %s86
    %p95 = scmp.eq.s32.totalorder %s14, 3
    %p96 = por %p94, %p95
    %p97 = scmp.ne.s32.totalorder %s86, %s87
    %p98 = scmp.eq.s32.totalorder %s14, 0
    %p99 = por %p97, %p98
    %p100 = scmp.ne.s32.totalorder %s86, %s87
    %p101 = scmp.eq.s32.totalorder %s15, 3
    %p102 = por %p100, %p101
    %p104 = scmp.ne.s32.totalorder %s87, %s103
    %p105 = scmp.eq.s32.totalorder %s15, 0
    %p106 = por %p104, %p105
    %s107 = ssub.s32 %s16, %s28
    %s108 = ssub.s32 %s17, %s24
    %s109 = sor.u32 %s107, %s108
    %p110 = scmp.eq.s32.totalorder %s109, 0
    %s112 = sadd.s32 %s111, 1
    %s113 = scalar_select %p110, %s111, %s112
    %p116 = pneg %p110
    %p117 = scmp.eq.s32.totalorder %s9, 3
    %p118 = por %p116, %p117
    %p119 = scmp.ne.s32.totalorder %s111, %s114
    %p120 = scmp.eq.s32.totalorder %s9, 0
    %p121 = por %p119, %p120
    %p122 = scmp.ne.s32.totalorder %s111, %s114
    %p123 = scmp.eq.s32.totalorder %s14, 3
    %p124 = por %p122, %p123
    %p125 = scmp.ne.s32.totalorder %s114, %s115
    %p126 = scmp.eq.s32.totalorder %s14, 0
    %p127 = por %p125, %p126
    %p128 = scmp.ne.s32.totalorder %s114, %s115
    %p129 = scmp.eq.s32.totalorder %s15, 3
    %p130 = por %p128, %p129
    %p132 = scmp.ne.s32.totalorder %s115, %s131
    %p133 = scmp.eq.s32.totalorder %s15, 0
    %p134 = por %p132, %p133
    %p135 = scmp.le.s32.totalorder 1, %s9
    %p136 = scmp.lt.s32.totalorder %s9, 5
    %p137 = pnand %p135, %p136
    %p138 = pneg %p137
    // Predicated region
    $region9: #{tpu_custom_call.1} parent=5 // pred_check
      _
    $region10: #{tpu_custom_call.1} parent=5 // pred_check_branch
      %140 = sbr.rel (%p137) target = $region12
    $region11: #{tpu_custom_call.1} parent=5 // pred_region
      %s141 = ssub.s32 %s9, 1
      // Predicated region
      $region13: #{tpu_custom_call.1} parent=11 // pred_check
        %p142 = pneg %p73
      $region14: #{tpu_custom_call.1} parent=11 // pred_check_branch
        %144 = sbr.rel (%p142) target = $region16
      $region15: #{tpu_custom_call.1} parent=11 // pred_region
        %p145 = scmp.lt.s32.totalorder %s19, 0
        %s146 = scalar_select %p145, %s19, 0
        %s147 = smul.addr %s146, 4
        %s148 = scalar_lea.vmem %s1, %s147
      $region16: #{tpu_custom_call.1} parent=11 // pred_fallthru
        _
      // Predicated region
      $region17: #{tpu_custom_call.1} parent=11 // pred_check
        %p149 = pneg %p99
      $region18: #{tpu_custom_call.1} parent=11 // pred_check_branch
        %151 = sbr.rel (%p149) target = $region20
      $region19: #{tpu_custom_call.1} parent=11 // pred_region
        %p152 = scmp.lt.s32.totalorder %s19, 0
        %s153 = scalar_select %p152, %s19, 0
        %s154 = scalar_lea.vmem %s2, %s153
      $region20: #{tpu_custom_call.1} parent=11 // pred_fallthru
        _
    $region12: #{tpu_custom_call.1} parent=5 // pred_fallthru
      _
    %p155 = scmp.lt.s32.totalorder %s9, 4
    // Predicated region
    $region21: #{tpu_custom_call.1} parent=5 // pred_check
      %p156 = pneg %p155
    $region22: #{tpu_custom_call.1} parent=5 // pred_check_branch
      %158 = sbr.rel (%p156) target = $region24
    $region23: #{tpu_custom_call.1} parent=5 // pred_region
      // Predicated region
      $region25: #{tpu_custom_call.1} parent=23 // pred_check
        %p159 = pneg %p41
      $region26: #{tpu_custom_call.1} parent=23 // pred_check_branch
        %161 = sbr.rel (%p159) target = $region28
      $region27: #{tpu_custom_call.1} parent=23 // pred_region
        %s162 = smul.u32 16, %s16
        %p163 = scmp.lt.s32.totalorder %s162, 63
        %s164 = scalar_select %p163, %s162, 63
        %s165 = smul.addr %s164, 4
        %s166 = scalar_lea.vmem %s0, %s165
        %s167 = smul.u32 16, %s16
      $region28: #{tpu_custom_call.1} parent=23 // pred_fallthru
        _
    $region24: #{tpu_custom_call.1} parent=5 // pred_fallthru
      _
    %p168 = scmp.le.s32.totalorder 1, %s9
    %p169 = scmp.lt.s32.totalorder %s9, 5
    %p170 = pnand %p168, %p169
    %p171 = pneg %p170
    // Predicated region
    $region29: #{tpu_custom_call.1} parent=5 // pred_check
      _
    $region30: #{tpu_custom_call.1} parent=5 // pred_check_branch
      %173 = sbr.rel (%p170) target = $region32
    $region31: #{tpu_custom_call.1} parent=5 // pred_region
      %s174 = ssub.s32 %s9, 1
      %s175 = smul.u32 16, %s18
      %p176 = scmp.lt.s32.totalorder %s175, 63
      %s177 = scalar_select %p176, %s175, 63
      %s178 = smul.addr %s177, 4
      %s179 = scalar_lea.vmem %s0, %s178
      %p180 = pneg %p47
      %p181 = pneg %p44
      %p182 = scmp.lt.s32.totalorder %s19, 0
      %s183 = scalar_select %p182, %s19, 0
      %s184 = smul.addr %s183, 4
      %s185 = scalar_lea.vmem %s1, %s184
      %p186 = pneg %p73
      %p187 = pneg %p70
      %p188 = scmp.lt.s32.totalorder %s19, 0
      %s189 = scalar_select %p188, %s19, 0
      %s190 = scalar_lea.vmem %s2, %s189
      %p191 = pneg %p99
      %p192 = pneg %p96
      %p193 = pneg %p127
      %p194 = pneg %p124
      %s195 = smul.u32 16, %s18
      %p196 = scmp.lt.s32.totalorder %s195, 63
      %s197 = scalar_select %p196, %s195, 63
      %p198 = scmp.lt.s32.totalorder %s19, 0
      %s199 = scalar_select %p198, %s19, 0
      %s200 = sadd.s32 %s199, %s197
      %s201 = smul.addr %s200, 8
      %s202 = scalar_lea.vmem %s3, %s201
      %s203 = smul.u32 16, %s18
      %p204 = scmp.lt.s32.totalorder %s203, 63
      %s205 = scalar_select %p204, %s203, 63
      %s206 = smul.addr %s205, 4
      %s207 = scalar_lea.vmem %s0, %s206
      %s208 = smul.u32 16, %s18
      %p209 = scmp.lt.s32.totalorder %s19, 0
      %s210 = scalar_select %p209, %s19, 0
      %s211 = smul.addr %s210, 4
      %s212 = scalar_lea.vmem %s1, %s211
      %p213 = scmp.lt.s32.totalorder %s19, 0
      %s214 = scalar_select %p213, %s19, 0
      %s215 = scalar_lea.vmem %s2, %s214
      %s216 = smul.u32 16, %s18
      %p217 = scmp.lt.s32.totalorder %s216, 63
      %s218 = scalar_select %p217, %s216, 63
      %p219 = scmp.lt.s32.totalorder %s19, 0
      %s220 = scalar_select %p219, %s19, 0
      %s221 = sadd.s32 %s220, %s218
      %s222 = smul.addr %s221, 8
      %s223 = scalar_lea.vmem %s3, %s222
      %s224 = smul.u32 16, %s18
      %v226 = vld [vmem:[%s207] sm:$0xf]
      %v227 = vld [vmem:[%s207 + $0x4] sm:$0xf]
      %v228 = vld [vmem:[%s207 + $0x8] sm:$0xf]
      %v229 = vld [vmem:[%s207 + $0xc] sm:$0xf]
      %v230 = vld [vmem:[%s207 + $0x10] sm:$0xf]
      %v231 = vld [vmem:[%s207 + $0x14] sm:$0xf]
      %v232 = vld [vmem:[%s207 + $0x18] sm:$0xf]
      %v233 = vld [vmem:[%s207 + $0x1c] sm:$0xf]
      %v234 = vld [vmem:[%s207 + $0x20] sm:$0xf]
      %v235 = vld [vmem:[%s207 + $0x24] sm:$0xf]
      %v236 = vld [vmem:[%s207 + $0x28] sm:$0xf]
      %v237 = vld [vmem:[%s207 + $0x2c] sm:$0xf]
      %v238 = vld [vmem:[%s207 + $0x30] sm:$0xf]
      %v239 = vld [vmem:[%s207 + $0x34] sm:$0xf]
      %v240 = vld [vmem:[%s207 + $0x38] sm:$0xf]
      %v241 = vld [vmem:[%s207 + $0x3c] sm:$0xf]
      %v242 = vld [vmem:[%s212] sm:$0xf]
      %v243 = vld [vmem:[%s212 + $0x4] sm:$0xf]
      %v244 = vld [vmem:[%s212 + $0x8] sm:$0xf]
      %v245 = vld [vmem:[%s212 + $0xc] sm:$0x3]
      %v246 = vld [vmem:[%s215] sm:$0x1]
      %v248 = vperm.slane %v246, 0
      %v266 = vunpack.c.l.b16 %v226
      %v267 = vunpack.c.l.b16 %v227
      %v268 = vunpack.c.l.b16 %v228
      %v269 = vunpack.c.l.b16 %v229
      %v270 = vunpack.c.l.b16 %v230
      %v271 = vunpack.c.l.b16 %v231
      %v272 = vunpack.c.l.b16 %v232
      %v273 = vunpack.c.l.b16 %v233
      %v274 = vunpack.c.l.b16 %v234
      %v275 = vunpack.c.l.b16 %v235
      %v276 = vunpack.c.l.b16 %v236
      %v277 = vunpack.c.l.b16 %v237
      %v278 = vunpack.c.l.b16 %v238
      %v279 = vunpack.c.l.b16 %v239
      %v280 = vunpack.c.l.b16 %v240
      %v281 = vunpack.c.l.b16 %v241
      %v282 = vpack.c.b16 %v267, %v266
      %v283 = vpack.c.b16 %v269, %v268
      %v284 = vpack.c.b16 %v271, %v270
      %v285 = vpack.c.b16 %v273, %v272
      %v286 = vpack.c.b16 %v275, %v274
      %v287 = vpack.c.b16 %v277, %v276
      %v288 = vpack.c.b16 %v279, %v278
      %v289 = vpack.c.b16 %v281, %v280
      %v294 = vunpack.c.l.b16 %v242
      %v295 = vunpack.c.l.b16 %v243
      %v296 = vunpack.c.l.b16 %v244
      %v297 = vunpack.c.l.b16 %v245
      %v298 = vpack.c.b16 %v295, %v294
      %v299 = vpack.c.b16 %v297, %v296
      %vm301 = vcmask 220160
      %v303 = vsel %vm301, %v282, 0
      %v306 = vsel %vm301, %v283, 0
      %v309 = vsel %vm301, %v284, 0
      %v312 = vsel %vm301, %v285, 0
      %v315 = vsel %vm301, %v286, 0
      %v318 = vsel %vm301, %v287, 0
      %v321 = vsel %vm301, %v288, 0
      %v324 = vsel %vm301, %v289, 0
      %vm326 = vcmask 1044480
      %vm327 = vcmask 1045504
      %v328 = vsel %vm326, 4294967295, 65535
      %v329 = vsel %vm327, %v328, 0
      %v331 = vand.u32 %v299, %v329
      %333 = vmatpush.bf16.msra.mxu0 0
      %334 = vmatpush.bf16.msra.mxu0 0
      %335 = vmatpush.bf16.msra.mxu0 0
      %336 = vmatpush.bf16.msra.mxu0 0
      %337 = vmatpush.bf16.msra.mxu0 0
      %338 = vmatpush.bf16.msra.mxu0 0
      %339 = vmatpush.bf16.msra.mxu0 %v331
      %340 = vmatpush.bf16.msra.mxu0 %v298
      %341 = vmatmul.bf16.gmra.mxu0 %v303
      %v342 = vpop.f32.mrf.mxu0
      %v343 = vadd.f32 %v248, %v342
      %v344 = vpop.f32.mrf.mxu0
      %v345 = vadd.f32 %v248, %v344
      %346 = vmatmul.bf16.gmra.mxu0 %v306
      %v347 = vpop.f32.mrf.mxu0
      %v348 = vadd.f32 %v248, %v347
      %v349 = vpop.f32.mrf.mxu0
      %v350 = vadd.f32 %v248, %v349
      %351 = vmatmul.bf16.gmra.mxu0 %v309
      %v352 = vpop.f32.mrf.mxu0
      %v353 = vadd.f32 %v248, %v352
      %v354 = vpop.f32.mrf.mxu0
      %v355 = vadd.f32 %v248, %v354
      %356 = vmatmul.bf16.gmra.mxu0 %v312
      %v357 = vpop.f32.mrf.mxu0
      %v358 = vadd.f32 %v248, %v357
      %v359 = vpop.f32.mrf.mxu0
      %v360 = vadd.f32 %v248, %v359
      %361 = vmatmul.bf16.gmra.mxu0 %v315
      %v362 = vpop.f32.mrf.mxu0
      %v363 = vadd.f32 %v248, %v362
      %v364 = vpop.f32.mrf.mxu0
      %v365 = vadd.f32 %v248, %v364
      %366 = vmatmul.bf16.gmra.mxu0 %v318
      %v367 = vpop.f32.mrf.mxu0
      %v368 = vadd.f32 %v248, %v367
      %v369 = vpop.f32.mrf.mxu0
      %v370 = vadd.f32 %v248, %v369
      %371 = vmatmul.bf16.gmra.mxu0 %v321
      %v372 = vpop.f32.mrf.mxu0
      %v373 = vadd.f32 %v248, %v372
      %v374 = vpop.f32.mrf.mxu0
      %v375 = vadd.f32 %v248, %v374
      %376 = vmatmul.bf16.gmra.mxu0 %v324
      %v377 = vpop.f32.mrf.mxu0
      %v378 = vadd.f32 %v248, %v377
      %v379 = vpop.f32.mrf.mxu0
      %v380 = vadd.f32 %v248, %v379
      %381 = vdwg.mxu0
      %v382 = vmax.f32 %v343, 0.0
      %v383 = vmax.f32 %v345, 0.0
      %v384 = vmax.f32 %v348, 0.0
      %v385 = vmax.f32 %v350, 0.0
      %v386 = vmax.f32 %v353, 0.0
      %v387 = vmax.f32 %v355, 0.0
      %v388 = vmax.f32 %v358, 0.0
      %v389 = vmax.f32 %v360, 0.0
      %v390 = vmax.f32 %v363, 0.0
      %v391 = vmax.f32 %v365, 0.0
      %v392 = vmax.f32 %v368, 0.0
      %v393 = vmax.f32 %v370, 0.0
      %v394 = vmax.f32 %v373, 0.0
      %v395 = vmax.f32 %v375, 0.0
      %v396 = vmax.f32 %v378, 0.0
      %v397 = vmax.f32 %v380, 0.0
      %vm398 = vcmask 523264
      %399 = vst.msk [vmem:[%s223] sm:$0xff] %vm398, %v382
      %400 = vst.msk [vmem:[%s223 + $0x8] sm:$0xff] %vm398, %v383
      %401 = vst.msk [vmem:[%s223 + $0x10] sm:$0xff] %vm398, %v384
      %402 = vst.msk [vmem:[%s223 + $0x18] sm:$0xff] %vm398, %v385
      %403 = vst.msk [vmem:[%s223 + $0x20] sm:$0xff] %vm398, %v386
      %404 = vst.msk [vmem:[%s223 + $0x28] sm:$0xff] %vm398, %v387
      %405 = vst.msk [vmem:[%s223 + $0x30] sm:$0xff] %vm398, %v388
      %406 = vst.msk [vmem:[%s223 + $0x38] sm:$0xff] %vm398, %v389
      %407 = vst.msk [vmem:[%s223 + $0x40] sm:$0xff] %vm398, %v390
      %408 = vst.msk [vmem:[%s223 + $0x48] sm:$0xff] %vm398, %v391
      %409 = vst.msk [vmem:[%s223 + $0x50] sm:$0xff] %vm398, %v392
      %410 = vst.msk [vmem:[%s223 + $0x58] sm:$0xff] %vm398, %v393
      %411 = vst.msk [vmem:[%s223 + $0x60] sm:$0xff] %vm398, %v394
      %412 = vst.msk [vmem:[%s223 + $0x68] sm:$0xff] %vm398, %v395
      %413 = vst.msk [vmem:[%s223 + $0x70] sm:$0xff] %vm398, %v396
      %414 = vst.msk [vmem:[%s223 + $0x78] sm:$0xff] %vm398, %v397
      %s415 = smul.u32 16, %s18
      %p416 = scmp.lt.s32.totalorder %s415, 63
      %s417 = scalar_select %p416, %s415, 63
      %p418 = scmp.lt.s32.totalorder %s19, 0
      %s419 = scalar_select %p418, %s19, 0
      %s420 = sadd.s32 %s419, %s417
      %s421 = smul.addr %s420, 8
      %s422 = scalar_lea.vmem %s3, %s421
      // Predicated region
      $region33: #{tpu_custom_call.1} parent=31 // pred_check
        %p423 = pneg %p124
      $region34: #{tpu_custom_call.1} parent=31 // pred_check_branch
        %425 = sbr.rel (%p423) target = $region36
      $region35: #{tpu_custom_call.1} parent=31 // pred_region
        %s426 = smul.u32 16, %s18
      $region36: #{tpu_custom_call.1} parent=31 // pred_fallthru
        _
    $region32: #{tpu_custom_call.1} parent=5 // pred_fallthru
      _
    %p427 = scmp.le.s32.totalorder 2, %s9
    // Predicated region
    $region37: #{tpu_custom_call.1} parent=5 // pred_check
      %p428 = pneg %p427
    $region38: #{tpu_custom_call.1} parent=5 // pred_check_branch
      %430 = sbr.rel (%p428) target = $region40
    $region39: #{tpu_custom_call.1} parent=5 // pred_region
      %s431 = ssub.s32 %s9, 2
      // Predicated region
      $region41: #{tpu_custom_call.1} parent=39 // pred_check
        %p432 = pneg %p130
      $region42: #{tpu_custom_call.1} parent=39 // pred_check_branch
        %434 = sbr.rel (%p432) target = $region44
      $region43: #{tpu_custom_call.1} parent=39 // pred_region
        %s435 = smul.u32 16, %s20
        %p436 = scmp.lt.s32.totalorder %s435, 63
        %s437 = scalar_select %p436, %s435, 63
        %p438 = scmp.lt.s32.totalorder %s21, 0
        %s439 = scalar_select %p438, %s21, 0
        %s440 = sadd.s32 %s439, %s437
        %s441 = smul.addr %s440, 8
        %s442 = scalar_lea.vmem %s3, %s441
      $region44: #{tpu_custom_call.1} parent=39 // pred_fallthru
        _
    $region40: #{tpu_custom_call.1} parent=5 // pred_fallthru
      _
  $region6: #{tpu_custom_call.1} parent=0 // loop_footer
    %s13 = sadd.s32 1, %s9
  $region7: #{tpu_custom_call.1} parent=0 // loop_footer_branch
    %8 = sbr.rel target = $region3
  $region8: #{tpu_custom_call.1} parent=0 // loop_exit
    _

</llo_original>
